<compile_context>
chip_gen: v7x
topology: tpu7x:2x2x1
jax: 0.10.0
libtpu: 0.0.40
codegen_flags: <defaults>
</compile_context>

<pallas_src>
import functools

import jax
import jax.numpy as jnp
from jax.experimental import pallas as pl
from jax.experimental.pallas import tpu as pltpu


_LANE = 128                              # lane width: pad all feature dims to this
_SUBLANE_BF16 = 16                       # bf16 sublane packing
_VMEM_BUDGET_BYTES = 40 * 1024 * 1024    # conservative working-set budget (v7x: 64 MiB phys)
_VMEM_LIMIT_BYTES = 48 * 1024 * 1024     # explicit scoped-VMEM limit (safe on v5e/v6e/v7x)


def _round_up(x, m):
    return ((x + m - 1) // m) * m


def _vmem_estimate_bytes(tile, pdims):
    """Rough resident-VMEM estimate used to cap the node tile."""
    est = 2 * tile * pdims[0] * 2            # input tile, double-buffered, bf16
    est += 2 * tile * pdims[-1] * 4          # output tile, double-buffered, f32
    for fi, fo in zip(pdims[:-1], pdims[1:]):
        est += fi * fo * 2 + fo * 4          # single-buffered bf16 weights + f32 bias
    est += 4 * tile * max(pdims) * 4         # live f32 activations / temporaries
    return est


def _pick_tile(n, pdims, tile_n):
    """Large node tile, multiple of 16 (bf16), >=2 grid blocks when possible (v7x megacore),
    shrunk if the VMEM working-set estimate exceeds the v7x budget."""
    n16 = _round_up(max(n, 1), _SUBLANE_BF16)
    tile = min(tile_n, _round_up((n16 + 1) // 2, _SUBLANE_BF16))
    tile = max(tile, _SUBLANE_BF16)
    while tile > _SUBLANE_BF16 and _vmem_estimate_bytes(tile, pdims) > _VMEM_BUDGET_BYTES:
        tile = max(_SUBLANE_BF16, _round_up(tile // 2, _SUBLANE_BF16))
    return tile


def _make_fused_kernel(num_layers, num_classes):
    """Fused kernel: (matmul + bias + SiLU) x (L-1) -> matmul + bias + log_softmax."""

    def kernel(x_ref, *rest):
        # rest = (w0, b0, w1, b1, ..., w_{L-1}, b_{L-1}, o_ref)
        o_ref = rest[-1]
        wb = rest[:-1]

        # Activation tile lives in VMEM / vregs for the whole network.
        h = x_ref[...]                                  # (tile, F0_pad) bf16

        for l in range(num_layers):
            w = wb[2 * l][...]                          # (F_in_pad, F_out_pad) bf16
            b = wb[2 * l + 1][...]                      # (1, F_out_pad)        f32

            # MXU-native bf16 matmul with f32 accumulation; lane-dense widths.
            y = jnp.dot(h, w, preferred_element_type=jnp.float32) + b

            if l < num_layers - 1:
                # SiLU in f32 (VPU/EUP f32 path).  Padded columns stay 0.
                a = y * jax.nn.sigmoid(y)
                h = a.astype(jnp.bfloat16)
            else:
                # Mask padded class lanes so log_softmax over real classes is exact.
                lane = jax.lax.broadcasted_iota(jnp.int32, y.shape, 1)
                y = jnp.where(lane < num_classes, y, -1e30)
                m = jnp.max(y, axis=-1, keepdims=True)
                s = y - m
                lse = jnp.log(jnp.sum(jnp.exp(s), axis=-1, keepdims=True))
                o_ref[...] = s - lse                    # lane-dense f32 store

    return kernel


@functools.partial(jax.jit, static_argnames=("tile_n",))
def cheb_conv_net_forward(x, params, tile_n=1024):
    """Full ChebConvNet forward in one fused pallas_call.

    x:      (N, num_features) f32 node features.
    params: tuple of (W, b) pairs, W: (F_in, F_out) f32, b: (F_out,) f32.
    """
    n, f_in = x.shape
    num_layers = len(params)
    num_classes = params[-1][0].shape[1]

    # Feature dims padded to 128 lanes (lane-dense VPU / stores).
    dims = [f_in] + [w.shape[1] for (w, _) in params]
    pdims = [_round_up(d, _LANE) for d in dims]

    tile = _pick_tile(n, pdims, tile_n)
    n_pad = _round_up(n, tile)

    # Pad nodes to a tile multiple and features to 128 lanes; ship as bf16
    # (halves the dominant activation HBM read).  Padded rows produce finite
    # garbage that is sliced off; log_softmax is row-wise so real rows are exact.
    x_p = jnp.pad(x, ((0, n_pad - n), (0, pdims[0] - f_in))).astype(jnp.bfloat16)

    flat_inputs = [x_p]
    in_specs = [pl.BlockSpec((tile, pdims[0]), lambda i: (i, 0))]
    for l, (w, b) in enumerate(params):
        fi, fo = w.shape
        pfi, pfo = pdims[l], pdims[l + 1]
        # Zero-padded, pre-transposed (F_in, F_out) weights as bf16; biases f32.
        w_p = jnp.pad(w, ((0, pfi - fi), (0, pfo - fo))).astype(jnp.bfloat16)
        b_p = jnp.pad(b, (0, pfo - fo)).reshape(1, pfo).astype(jnp.float32)
        flat_inputs.append(w_p)
        # Constant index_map -> single-buffer (double-buffering only burns VMEM).
        in_specs.append(
            pl.BlockSpec((pfi, pfo), lambda i: (0, 0), pipeline_mode=pl.Buffered(1))
        )
        flat_inputs.append(b_p)
        in_specs.append(
            pl.BlockSpec((1, pfo), lambda i: (0, 0), pipeline_mode=pl.Buffered(1))
        )

    out = pl.pallas_call(
        _make_fused_kernel(num_layers, num_classes),
        out_shape=jax.ShapeDtypeStruct((n_pad, pdims[-1]), jnp.float32),
        grid_spec=pltpu.PrefetchScalarGridSpec(
            num_scalar_prefetch=0,
            grid=(n_pad // tile,),
            in_specs=in_specs,
            out_specs=pl.BlockSpec((tile, pdims[-1]), lambda i: (i, 0)),
        ),
        compiler_params=pltpu.CompilerParams(
            dimension_semantics=("parallel",),        # node axis: megacore-shardable
            vmem_limit_bytes=_VMEM_LIMIT_BYTES,       # explicit, v7x-safe budget
        ),
    )(*flat_inputs)

    # Slice off padded rows and padded class lanes.
    return out[:n, :num_classes]


def init_params(key, num_features, num_classes, width):
    """Deterministic xavier-uniform weights / zero biases.

    Layer sizes mirror ChebConvNet.__init__:
      [num_features -> width[0]] + [width[i] -> width[i+1]] + [width[-1] -> num_classes]
    Weights are stored as (F_in, F_out) (transpose of torch's Linear weight).
    """
    dims = [num_features] + list(width) + [num_classes]
    params = []
    for f_in, f_out in zip(dims[:-1], dims[1:]):
        key, sub = jax.random.split(key)
        bound = (6.0 / (f_in + f_out)) ** 0.5
        w = jax.random.uniform(sub, (f_in, f_out), jnp.float32, -bound, bound)
        b = jnp.zeros((f_out,), jnp.float32)
        params.append((w, b))
    return params


def _reference(x, params):
    h = x
    for (w, b) in params[:-1]:
        y = h @ w + b
        h = y * jax.nn.sigmoid(y)
    w, b = params[-1]
    return jax.nn.log_softmax(h @ w + b, axis=1)


if __name__ == "__main__":
    # Small shapes consistent with the module: N nodes x num_features input,
    # hidden widths, num_classes output.  edge_index is unused (ChebConv K=1).
    num_features = 8
    width = [32, 16]
    num_classes = 4

    key = jax.random.PRNGKey(0)
    key, kx1, kx2 = jax.random.split(key, 3)
    params = tuple(init_params(key, num_features, num_classes, width))

    # Case 1: tiny graph (single grid block).
    x_small = jax.random.normal(kx1, (16, num_features), dtype=jnp.float32)
    out_small = jax.block_until_ready(cheb_conv_net_forward(x_small, params))
    assert out_small.shape == (16, num_classes)
    row_sums = jnp.sum(jnp.exp(out_small), axis=1)
    assert bool(jnp.all(jnp.abs(row_sums - 1.0) < 1e-4))
    ref_small = _reference(x_small, params)
    assert bool(jnp.all(jnp.abs(out_small - ref_small) < 5e-2))

    # Case 2: larger graph exercising multi-block grid + row padding/slicing.
    x_big = jax.random.normal(kx2, (3000, num_features), dtype=jnp.float32)
    out_big = jax.block_until_ready(cheb_conv_net_forward(x_big, params))
    assert out_big.shape == (3000, num_classes)
    row_sums_b = jnp.sum(jnp.exp(out_big), axis=1)
    assert bool(jnp.all(jnp.abs(row_sums_b - 1.0) < 1e-4))
    ref_big = _reference(x_big, params)
    assert bool(jnp.all(jnp.abs(out_big - ref_big) < 5e-2))

    print("KERNEL_OK")
</pallas_src>

<mosaic_0001>
module attributes {stable_mosaic.version = 11 : i64} {
  func.func @kernel(%arg0: i32, %arg1: memref<16x128xbf16, #tpu.memory_space<vmem>>, %arg2: memref<128x128xbf16, #tpu.memory_space<vmem>>, %arg3: memref<1x128xf32, #tpu.memory_space<vmem>>, %arg4: memref<128x128xbf16, #tpu.memory_space<vmem>>, %arg5: memref<1x128xf32, #tpu.memory_space<vmem>>, %arg6: memref<128x128xbf16, #tpu.memory_space<vmem>>, %arg7: memref<1x128xf32, #tpu.memory_space<vmem>>, %arg8: memref<16x128xf32, #tpu.memory_space<vmem>>) attributes {dimension_semantics = [#tpu.dimension_semantics<parallel>], iteration_bounds = array<i64: 1>, scalar_prefetch = 0 : i64, scratch_operands = 0 : i64, tpu.core_type = #tpu.core_type<tc>, window_params = [{transform_indices = @transform_0, window_bounds = array<i64: 16, 128>}, {pipeline_mode = #tpu.pipeline_mode<synchronous>, transform_indices = @transform_1, window_bounds = array<i64: 128, 128>}, {pipeline_mode = #tpu.pipeline_mode<synchronous>, transform_indices = @transform_2, window_bounds = array<i64: 1, 128>}, {pipeline_mode = #tpu.pipeline_mode<synchronous>, transform_indices = @transform_3, window_bounds = array<i64: 128, 128>}, {pipeline_mode = #tpu.pipeline_mode<synchronous>, transform_indices = @transform_4, window_bounds = array<i64: 1, 128>}, {pipeline_mode = #tpu.pipeline_mode<synchronous>, transform_indices = @transform_5, window_bounds = array<i64: 128, 128>}, {pipeline_mode = #tpu.pipeline_mode<synchronous>, transform_indices = @transform_6, window_bounds = array<i64: 1, 128>}, {transform_indices = @transform_7, window_bounds = array<i64: 16, 128>}]} {
    %c0 = arith.constant 0 : index
    %c0_0 = arith.constant 0 : index
    %0 = vector.load %arg1[%c0, %c0_0] : memref<16x128xbf16, #tpu.memory_space<vmem>>, vector<16x128xbf16>
    %c0_1 = arith.constant 0 : index
    %c0_2 = arith.constant 0 : index
    %1 = vector.load %arg2[%c0_1, %c0_2] : memref<128x128xbf16, #tpu.memory_space<vmem>>, vector<128x128xbf16>
    %c0_3 = arith.constant 0 : index
    %c0_4 = arith.constant 0 : index
    %2 = vector.load %arg3[%c0_3, %c0_4] : memref<1x128xf32, #tpu.memory_space<vmem>>, vector<1x128xf32>
    %cst = arith.constant dense<0.000000e+00> : vector<16x128xf32>
    %3 = tpu.matmul %0, %1, %cst {dimension_numbers = #tpu.dot_dimension_numbers<[1], [0], [0], [1], [0, 0, 1, 1], [], []>} : vector<16x128xbf16>, vector<128x128xbf16>, vector<16x128xf32> -> vector<16x128xf32>
    %4 = vector.broadcast %2 : vector<1x128xf32> to vector<16x128xf32>
    %5 = arith.addf %3, %4 : vector<16x128xf32>
    %6 = arith.negf %5 : vector<16x128xf32>
    %7 = math.exp %6 : vector<16x128xf32>
    %cst_5 = arith.constant 1.000000e+00 : f32
    %8 = vector.broadcast %cst_5 : f32 to vector<16x128xf32>
    %9 = arith.addf %8, %7 : vector<16x128xf32>
    %10 = arith.divf %8, %9 : vector<16x128xf32>
    %11 = arith.mulf %5, %10 : vector<16x128xf32>
    %12 = arith.truncf %11 : vector<16x128xf32> to vector<16x128xbf16>
    %c0_6 = arith.constant 0 : index
    %c0_7 = arith.constant 0 : index
    %13 = vector.load %arg4[%c0_6, %c0_7] : memref<128x128xbf16, #tpu.memory_space<vmem>>, vector<128x128xbf16>
    %c0_8 = arith.constant 0 : index
    %c0_9 = arith.constant 0 : index
    %14 = vector.load %arg5[%c0_8, %c0_9] : memref<1x128xf32, #tpu.memory_space<vmem>>, vector<1x128xf32>
    %cst_10 = arith.constant dense<0.000000e+00> : vector<16x128xf32>
    %15 = tpu.matmul %12, %13, %cst_10 {dimension_numbers = #tpu.dot_dimension_numbers<[1], [0], [0], [1], [0, 0, 1, 1], [], []>} : vector<16x128xbf16>, vector<128x128xbf16>, vector<16x128xf32> -> vector<16x128xf32>
    %16 = vector.broadcast %14 : vector<1x128xf32> to vector<16x128xf32>
    %17 = arith.addf %15, %16 : vector<16x128xf32>
    %18 = arith.negf %17 : vector<16x128xf32>
    %19 = math.exp %18 : vector<16x128xf32>
    %cst_11 = arith.constant 1.000000e+00 : f32
    %20 = vector.broadcast %cst_11 : f32 to vector<16x128xf32>
    %21 = arith.addf %20, %19 : vector<16x128xf32>
    %22 = arith.divf %20, %21 : vector<16x128xf32>
    %23 = arith.mulf %17, %22 : vector<16x128xf32>
    %24 = arith.truncf %23 : vector<16x128xf32> to vector<16x128xbf16>
    %c0_12 = arith.constant 0 : index
    %c0_13 = arith.constant 0 : index
    %25 = vector.load %arg6[%c0_12, %c0_13] : memref<128x128xbf16, #tpu.memory_space<vmem>>, vector<128x128xbf16>
    %c0_14 = arith.constant 0 : index
    %c0_15 = arith.constant 0 : index
    %26 = vector.load %arg7[%c0_14, %c0_15] : memref<1x128xf32, #tpu.memory_space<vmem>>, vector<1x128xf32>
    %cst_16 = arith.constant dense<0.000000e+00> : vector<16x128xf32>
    %27 = tpu.matmul %24, %25, %cst_16 {dimension_numbers = #tpu.dot_dimension_numbers<[1], [0], [0], [1], [0, 0, 1, 1], [], []>} : vector<16x128xbf16>, vector<128x128xbf16>, vector<16x128xf32> -> vector<16x128xf32>
    %28 = vector.broadcast %26 : vector<1x128xf32> to vector<16x128xf32>
    %29 = arith.addf %27, %28 : vector<16x128xf32>
    %30 = tpu.iota {dimensions = array<i32: 1>} : vector<16x128xi32>
    %c4_i32 = arith.constant 4 : i32
    %31 = vector.broadcast %c4_i32 : i32 to vector<16x128xi32>
    %32 = arith.cmpi slt, %30, %31 : vector<16x128xi32>
    %cst_17 = arith.constant -1.000000e+30 : f32
    %33 = vector.broadcast %cst_17 : f32 to vector<16x128xf32>
    %34 = arith.select %32, %29, %33 : vector<16x128xi1>, vector<16x128xf32>
    %cst_18 = arith.constant dense<0xFF800000> : vector<16xf32>
    %35 = vector.multi_reduction <maximumf>, %34, %cst_18 [1] : vector<16x128xf32> to vector<16xf32>
    %36 = vector.shape_cast %35 : vector<16xf32> to vector<16x1xf32>
    %37 = vector.broadcast %36 : vector<16x1xf32> to vector<16x128xf32>
    %38 = arith.subf %34, %37 : vector<16x128xf32>
    %39 = math.exp %38 : vector<16x128xf32>
    %cst_19 = arith.constant dense<0.000000e+00> : vector<16xf32>
    %40 = vector.multi_reduction <add>, %39, %cst_19 [1] : vector<16x128xf32> to vector<16xf32>
    %41 = vector.shape_cast %40 : vector<16xf32> to vector<16x1xf32>
    %42 = math.log %41 : vector<16x1xf32>
    %43 = vector.broadcast %42 : vector<16x1xf32> to vector<16x128xf32>
    %44 = arith.subf %38, %43 : vector<16x128xf32>
    %c0_20 = arith.constant 0 : index
    %c0_21 = arith.constant 0 : index
    %45 = vector.load %arg8[%c0_20, %c0_21] : memref<16x128xf32, #tpu.memory_space<vmem>>, vector<16x128xf32>
    tpu.vector_store %arg8[%c0_20, %c0_21], %44 {strides = array<i32>} : memref<16x128xf32, #tpu.memory_space<vmem>>, vector<16x128xf32>,
    return
  }
  func.func @transform_0(%arg0: i32) -> (i32, i32) {
    %c0_i32 = arith.constant 0 : i32
    %c0_i32_0 = arith.constant 0 : i32
    return %arg0, %c0_i32 : i32, i32
  }
  func.func @transform_1(%arg0: i32) -> (i32, i32) {
    %c0_i32 = arith.constant 0 : i32
    %c0_i32_0 = arith.constant 0 : i32
    %c0_i32_1 = arith.constant 0 : i32
    return %c0_i32, %c0_i32_0 : i32, i32
  }
  func.func @transform_2(%arg0: i32) -> (i32, i32) {
    %c0_i32 = arith.constant 0 : i32
    %c0_i32_0 = arith.constant 0 : i32
    %c0_i32_1 = arith.constant 0 : i32
    return %c0_i32, %c0_i32_0 : i32, i32
  }
  func.func @transform_3(%arg0: i32) -> (i32, i32) {
    %c0_i32 = arith.constant 0 : i32
    %c0_i32_0 = arith.constant 0 : i32
    %c0_i32_1 = arith.constant 0 : i32
    return %c0_i32, %c0_i32_0 : i32, i32
  }
  func.func @transform_4(%arg0: i32) -> (i32, i32) {
    %c0_i32 = arith.constant 0 : i32
    %c0_i32_0 = arith.constant 0 : i32
    %c0_i32_1 = arith.constant 0 : i32
    return %c0_i32, %c0_i32_0 : i32, i32
  }
  func.func @transform_5(%arg0: i32) -> (i32, i32) {
    %c0_i32 = arith.constant 0 : i32
    %c0_i32_0 = arith.constant 0 : i32
    %c0_i32_1 = arith.constant 0 : i32
    return %c0_i32, %c0_i32_0 : i32, i32
  }
  func.func @transform_6(%arg0: i32) -> (i32, i32) {
    %c0_i32 = arith.constant 0 : i32
    %c0_i32_0 = arith.constant 0 : i32
    %c0_i32_1 = arith.constant 0 : i32
    return %c0_i32, %c0_i32_0 : i32, i32
  }
  func.func @transform_7(%arg0: i32) -> (i32, i32) {
    %c0_i32 = arith.constant 0 : i32
    %c0_i32_0 = arith.constant 0 : i32
    return %arg0, %c0_i32 : i32, i32
  }
}

</mosaic_0001>

<llo_original>
// kernel: cheb_conv_net_forward.1
$region0: #{cheb_conv_net_forward.1}
  #allocation0 [shape = 'u32[]', space=smem, size = 0x4, offset = 0x4, fixed_abs, tag = 'smem constant byte address 0x4 - core index']
  #allocation1 [shape = 'u32[144,128]{1,0:T(1,128)}', space=vmem, size = 0x12000, scoped, tag = 'internal scratch']
  %s0 = inlined_call_operand.vmem [shape: bf16[16,128], index: 0, kind: input, shape index: {}]
  %s1 = inlined_call_operand.vmem [shape: bf16[128,128], index: 1, kind: input, shape index: {}]
  %s2 = inlined_call_operand.vmem [shape: f32[1,128], index: 2, kind: input, shape index: {}]
  %s3 = inlined_call_operand.vmem [shape: bf16[128,128], index: 3, kind: input, shape index: {}]
  %s4 = inlined_call_operand.vmem [shape: f32[1,128], index: 4, kind: input, shape index: {}]
  %s5 = inlined_call_operand.vmem [shape: bf16[128,128], index: 5, kind: input, shape index: {}]
  %s6 = inlined_call_operand.vmem [shape: f32[1,128], index: 6, kind: input, shape index: {}]
  %s7 = inlined_call_operand.vmem [shape: f32[16,128], index: 7, kind: output, shape index: {}]
  %s8 = sld [smem:[#allocation0]]
  $region38: #{cheb_conv_net_forward.1} parent=0
    _
  %s10 = ssub.s32 1, %s8
  %s11 = scalar_select 0, %s10, %s8
  // Predicated region
  $region2: #{cheb_conv_net_forward.1} parent=0 // pred_check
    _
  $region3: #{cheb_conv_net_forward.1} parent=0 // pred_check_branch
    %13 = sbr.rel (0) target = $region5
  $region4: #{cheb_conv_net_forward.1} parent=0 // pred_region
    _
  $region5: #{cheb_conv_net_forward.1} parent=0 // pred_fallthru
    _
  // Predicated region
  $region6: #{cheb_conv_net_forward.1} parent=0 // pred_check
    _
  $region7: #{cheb_conv_net_forward.1} parent=0 // pred_check_branch
    %15 = sbr.rel (0) target = $region9
  $region8: #{cheb_conv_net_forward.1} parent=0 // pred_region
    _
  $region9: #{cheb_conv_net_forward.1} parent=0 // pred_fallthru
    _
  // Predicated region
  $region10: #{cheb_conv_net_forward.1} parent=0 // pred_check
    _
  $region11: #{cheb_conv_net_forward.1} parent=0 // pred_check_branch
    %17 = sbr.rel (0) target = $region13
  $region12: #{cheb_conv_net_forward.1} parent=0 // pred_region
    _
  $region13: #{cheb_conv_net_forward.1} parent=0 // pred_fallthru
    _
  // Predicated region
  $region14: #{cheb_conv_net_forward.1} parent=0 // pred_check
    _
  $region15: #{cheb_conv_net_forward.1} parent=0 // pred_check_branch
    %19 = sbr.rel (0) target = $region17
  $region16: #{cheb_conv_net_forward.1} parent=0 // pred_region
    _
  $region17: #{cheb_conv_net_forward.1} parent=0 // pred_fallthru
    _
  // Predicated region
  $region18: #{cheb_conv_net_forward.1} parent=0 // pred_check
    _
  $region19: #{cheb_conv_net_forward.1} parent=0 // pred_check_branch
    %21 = sbr.rel (0) target = $region21
  $region20: #{cheb_conv_net_forward.1} parent=0 // pred_region
    _
  $region21: #{cheb_conv_net_forward.1} parent=0 // pred_fallthru
    _
  // Predicated region
  $region22: #{cheb_conv_net_forward.1} parent=0 // pred_check
    _
  $region23: #{cheb_conv_net_forward.1} parent=0 // pred_check_branch
    %23 = sbr.rel (0) target = $region25
  $region24: #{cheb_conv_net_forward.1} parent=0 // pred_region
    _
  $region25: #{cheb_conv_net_forward.1} parent=0 // pred_fallthru
    _
  // Predicated region
  $region26: #{cheb_conv_net_forward.1} parent=0 // pred_check
    _
  $region27: #{cheb_conv_net_forward.1} parent=0 // pred_check_branch
    %25 = sbr.rel (0) target = $region29
  $region28: #{cheb_conv_net_forward.1} parent=0 // pred_region
    _
  $region29: #{cheb_conv_net_forward.1} parent=0 // pred_fallthru
    _
  %v27 = vld [vmem:[%s0] sm:$0xf]
  %v28 = vld [vmem:[%s0 + $0x4] sm:$0xf]
  %v29 = vld [vmem:[%s1] sm:$0xf]
  %v30 = vld [vmem:[%s1 + $0x4] sm:$0xf]
  %v31 = vld [vmem:[%s1 + $0x8] sm:$0xf]
  %v32 = vld [vmem:[%s1 + $0xc] sm:$0xf]
  %v33 = vld [vmem:[%s1 + $0x10] sm:$0xf]
  %v34 = vld [vmem:[%s1 + $0x14] sm:$0xf]
  %v35 = vld [vmem:[%s1 + $0x18] sm:$0xf]
  %v36 = vld [vmem:[%s1 + $0x1c] sm:$0xf]
  %v37 = vld [vmem:[%s1 + $0x20] sm:$0xf]
  %v38 = vld [vmem:[%s1 + $0x24] sm:$0xf]
  %v39 = vld [vmem:[%s1 + $0x28] sm:$0xf]
  %v40 = vld [vmem:[%s1 + $0x2c] sm:$0xf]
  %v41 = vld [vmem:[%s1 + $0x30] sm:$0xf]
  %v42 = vld [vmem:[%s1 + $0x34] sm:$0xf]
  %v43 = vld [vmem:[%s1 + $0x38] sm:$0xf]
  %v44 = vld [vmem:[%s1 + $0x3c] sm:$0xf]
  %v45 = vld [vmem:[%s2] sm:$0x1]
  %v47 = vlaneseq
  %v48 = vshrl.u32 %v47, 7
  %v49 = vsub.s32 0, %v48
  %v50 = vrot.slane %v45, %v49
  %v54 = vunpack.c.l.b16 %v27
  %v55 = vunpack.c.l.b16 %v28
  %v56 = vpack.c.b16 %v55, %v54
  %v74 = vunpack.c.l.b16 %v29
  %v75 = vunpack.c.l.b16 %v30
  %v76 = vunpack.c.l.b16 %v31
  %v77 = vunpack.c.l.b16 %v32
  %v78 = vunpack.c.l.b16 %v33
  %v79 = vunpack.c.l.b16 %v34
  %v80 = vunpack.c.l.b16 %v35
  %v81 = vunpack.c.l.b16 %v36
  %v82 = vunpack.c.l.b16 %v37
  %v83 = vunpack.c.l.b16 %v38
  %v84 = vunpack.c.l.b16 %v39
  %v85 = vunpack.c.l.b16 %v40
  %v86 = vunpack.c.l.b16 %v41
  %v87 = vunpack.c.l.b16 %v42
  %v88 = vunpack.c.l.b16 %v43
  %v89 = vunpack.c.l.b16 %v44
  %v90 = vpack.c.b16 %v75, %v74
  %v91 = vpack.c.b16 %v77, %v76
  %v92 = vpack.c.b16 %v79, %v78
  %v93 = vpack.c.b16 %v81, %v80
  %v94 = vpack.c.b16 %v83, %v82
  %v95 = vpack.c.b16 %v85, %v84
  %v96 = vpack.c.b16 %v87, %v86
  %v97 = vpack.c.b16 %v89, %v88
  %106 = vmatprep.subr.bf16.mxu0 0
  %107 = vmatpush1.bf16.msra.mxu0 %v90
  %108 = vmatprep.subr.bf16.mxu0 0
  %109 = vmatpush1.bf16.msra.mxu0 %v91
  %110 = vmatprep.subr.bf16.mxu0 0
  %111 = vmatpush1.bf16.msra.mxu0 %v92
  %112 = vmatprep.subr.bf16.mxu0 0
  %113 = vmatpush1.bf16.msra.mxu0 %v93
  %114 = vmatprep.subr.bf16.mxu0 0
  %115 = vmatpush1.bf16.msra.mxu0 %v94
  %116 = vmatprep.subr.bf16.mxu0 0
  %117 = vmatpush1.bf16.msra.mxu0 %v95
  %118 = vmatprep.subr.bf16.mxu0 0
  %119 = vmatpush1.bf16.msra.mxu0 %v96
  %120 = vmatprep.subr.bf16.mxu0 0
  %121 = vmatpush1.bf16.msra.mxu0 %v97
  %122 = vmatprep.subr.bf16.mxu0 0
  %123 = vmatpush1.bf16.msra.mxu0 0
  %124 = vmatprep.subr.bf16.mxu0 0
  %125 = vmatpush1.bf16.msra.mxu0 0
  %126 = vmatprep.subr.bf16.mxu0 0
  %127 = vmatpush1.bf16.msra.mxu0 0
  %128 = vmatprep.subr.bf16.mxu0 0
  %129 = vmatpush1.bf16.msra.mxu0 0
  %130 = vmatprep.subr.bf16.mxu0 0
  %131 = vmatpush1.bf16.msra.mxu0 0
  %132 = vmatprep.subr.bf16.mxu0 0
  %133 = vmatpush1.bf16.msra.mxu0 0
  %134 = vmatprep.subr.bf16.mxu0 0
  %135 = vmatpush1.bf16.msra.mxu0 0
  %136 = vmatprep.subr.bf16.mxu0 0
  %137 = vmatpush1.bf16.msra.mxu0 0
  %138 = vmatprep.mubr.bf16.mxu0 0
  %139 = vmatmul.mubr.bf16.gmra.mrb[0].mxu0 %v56
  %v140 = vpop.f32.mrb[0].mxu0
  %v141 = vadd.f32 %v50, %v140
  %v142 = vpop.f32.mrb[0].mxu0
  %v143 = vpop.f32.mrb[0].mxu0
  %v144 = vadd.f32 %v50, %v143
  %v145 = vpop.f32.mrb[0].mxu0
  %146 = vdwg.mxu0
  %v147 = vxor.u32 %v141, 2147483648
  %v148 = vxor.u32 %v144, 2147483648
  %v149 = vmul.f32 %v147, 1.442695
  %v150 = vpow.pop %v149
  %v151 = vmul.f32 %v148, 1.442695
  %v152 = vpow.pop %v151
  %v153 = vadd.f32 %v150, 1.0
  %v154 = vadd.f32 %v152, 1.0
  %v155 = vrcp.pop %v153
  %v156 = vmul.f32 1.0, %v155
  %v157 = vrcp.pop %v154
  %v158 = vmul.f32 1.0, %v157
  %v159 = vmul.f32 %v141, %v156
  %v160 = vmul.f32 %v144, %v158
  %v161 = vpack.c.bf16 %v160, %v159
  %v162 = vld [vmem:[%s3] sm:$0xf]
  %v163 = vld [vmem:[%s3 + $0x4] sm:$0xf]
  %v164 = vld [vmem:[%s3 + $0x8] sm:$0xf]
  %v165 = vld [vmem:[%s3 + $0xc] sm:$0xf]
  %v166 = vld [vmem:[%s3 + $0x10] sm:$0xf]
  %v167 = vld [vmem:[%s3 + $0x14] sm:$0xf]
  %v168 = vld [vmem:[%s3 + $0x18] sm:$0xf]
  %v169 = vld [vmem:[%s3 + $0x1c] sm:$0xf]
  %v170 = vld [vmem:[%s3 + $0x20] sm:$0xf]
  %v171 = vld [vmem:[%s3 + $0x24] sm:$0xf]
  %v172 = vld [vmem:[%s3 + $0x28] sm:$0xf]
  %v173 = vld [vmem:[%s3 + $0x2c] sm:$0xf]
  %v174 = vld [vmem:[%s3 + $0x30] sm:$0xf]
  %v175 = vld [vmem:[%s3 + $0x34] sm:$0xf]
  %v176 = vld [vmem:[%s3 + $0x38] sm:$0xf]
  %v177 = vld [vmem:[%s3 + $0x3c] sm:$0xf]
  %v178 = vld [vmem:[%s4] sm:$0x1]
  %v180 = vlaneseq
  %v181 = vshrl.u32 %v180, 7
  %v182 = vsub.s32 0, %v181
  %v183 = vrot.slane %v178, %v182
  %v201 = vunpack.c.l.b16 %v162
  %v202 = vunpack.c.l.b16 %v163
  %v203 = vunpack.c.l.b16 %v164
  %v204 = vunpack.c.l.b16 %v165
  %v205 = vunpack.c.l.b16 %v166
  %v206 = vunpack.c.l.b16 %v167
  %v207 = vunpack.c.l.b16 %v168
  %v208 = vunpack.c.l.b16 %v169
  %v209 = vunpack.c.l.b16 %v170
  %v210 = vunpack.c.l.b16 %v171
  %v211 = vunpack.c.l.b16 %v172
  %v212 = vunpack.c.l.b16 %v173
  %v213 = vunpack.c.l.b16 %v174
  %v214 = vunpack.c.l.b16 %v175
  %v215 = vunpack.c.l.b16 %v176
  %v216 = vunpack.c.l.b16 %v177
  %v217 = vpack.c.b16 %v202, %v201
  %v218 = vpack.c.b16 %v204, %v203
  %v219 = vpack.c.b16 %v206, %v205
  %v220 = vpack.c.b16 %v208, %v207
  %v221 = vpack.c.b16 %v210, %v209
  %v222 = vpack.c.b16 %v212, %v211
  %v223 = vpack.c.b16 %v214, %v213
  %v224 = vpack.c.b16 %v216, %v215
  %233 = vmatprep.subr.bf16.mxu0 0
  %234 = vmatpush1.bf16.msra.mxu0 %v217
  %235 = vmatprep.subr.bf16.mxu0 0
  %236 = vmatpush1.bf16.msra.mxu0 %v218
  %237 = vmatprep.subr.bf16.mxu0 0
  %238 = vmatpush1.bf16.msra.mxu0 %v219
  %239 = vmatprep.subr.bf16.mxu0 0
  %240 = vmatpush1.bf16.msra.mxu0 %v220
  %241 = vmatprep.subr.bf16.mxu0 0
  %242 = vmatpush1.bf16.msra.mxu0 %v221
  %243 = vmatprep.subr.bf16.mxu0 0
  %244 = vmatpush1.bf16.msra.mxu0 %v222
  %245 = vmatprep.subr.bf16.mxu0 0
  %246 = vmatpush1.bf16.msra.mxu0 %v223
  %247 = vmatprep.subr.bf16.mxu0 0
  %248 = vmatpush1.bf16.msra.mxu0 %v224
  %249 = vmatprep.subr.bf16.mxu0 0
  %250 = vmatpush1.bf16.msra.mxu0 0
  %251 = vmatprep.subr.bf16.mxu0 0
  %252 = vmatpush1.bf16.msra.mxu0 0
  %253 = vmatprep.subr.bf16.mxu0 0
  %254 = vmatpush1.bf16.msra.mxu0 0
  %255 = vmatprep.subr.bf16.mxu0 0
  %256 = vmatpush1.bf16.msra.mxu0 0
  %257 = vmatprep.subr.bf16.mxu0 0
  %258 = vmatpush1.bf16.msra.mxu0 0
  %259 = vmatprep.subr.bf16.mxu0 0
  %260 = vmatpush1.bf16.msra.mxu0 0
  %261 = vmatprep.subr.bf16.mxu0 0
  %262 = vmatpush1.bf16.msra.mxu0 0
  %263 = vmatprep.subr.bf16.mxu0 0
  %264 = vmatpush1.bf16.msra.mxu0 0
  %265 = vmatprep.mubr.bf16.mxu0 0
  %266 = vmatmul.mubr.bf16.gmra.mrb[0].mxu0 %v161
  %v267 = vpop.f32.mrb[0].mxu0
  %v268 = vadd.f32 %v183, %v267
  %v269 = vpop.f32.mrb[0].mxu0
  %v270 = vpop.f32.mrb[0].mxu0
  %v271 = vadd.f32 %v183, %v270
  %v272 = vpop.f32.mrb[0].mxu0
  %273 = vdwg.mxu0
  %v274 = vxor.u32 %v268, 2147483648
  %v275 = vxor.u32 %v271, 2147483648
  %v276 = vmul.f32 %v274, 1.442695
  %v277 = vpow.pop %v276
  %v278 = vmul.f32 %v275, 1.442695
  %v279 = vpow.pop %v278
  %v280 = vadd.f32 %v277, 1.0
  %v281 = vadd.f32 %v279, 1.0
  %v282 = vrcp.pop %v280
  %v283 = vmul.f32 1.0, %v282
  %v284 = vrcp.pop %v281
  %v285 = vmul.f32 1.0, %v284
  %v286 = vmul.f32 %v268, %v283
  %v287 = vmul.f32 %v271, %v285
  %v288 = vpack.c.bf16 %v287, %v286
  %v289 = vld [vmem:[%s5] sm:$0xf]
  %v290 = vld [vmem:[%s5 + $0x4] sm:$0xf]
  %v291 = vld [vmem:[%s5 + $0x8] sm:$0xf]
  %v292 = vld [vmem:[%s5 + $0xc] sm:$0xf]
  %v293 = vld [vmem:[%s5 + $0x10] sm:$0xf]
  %v294 = vld [vmem:[%s5 + $0x14] sm:$0xf]
  %v295 = vld [vmem:[%s5 + $0x18] sm:$0xf]
  %v296 = vld [vmem:[%s5 + $0x1c] sm:$0xf]
  %v297 = vld [vmem:[%s5 + $0x20] sm:$0xf]
  %v298 = vld [vmem:[%s5 + $0x24] sm:$0xf]
  %v299 = vld [vmem:[%s5 + $0x28] sm:$0xf]
  %v300 = vld [vmem:[%s5 + $0x2c] sm:$0xf]
  %v301 = vld [vmem:[%s5 + $0x30] sm:$0xf]
  %v302 = vld [vmem:[%s5 + $0x34] sm:$0xf]
  %v303 = vld [vmem:[%s5 + $0x38] sm:$0xf]
  %v304 = vld [vmem:[%s5 + $0x3c] sm:$0xf]
  %v305 = vld [vmem:[%s6] sm:$0x1]
  %v307 = vlaneseq
  %v308 = vshrl.u32 %v307, 7
  %v309 = vsub.s32 0, %v308
  %v310 = vrot.slane %v305, %v309
  %v328 = vunpack.c.l.b16 %v289
  %v329 = vunpack.c.l.b16 %v290
  %v330 = vunpack.c.l.b16 %v291
  %v331 = vunpack.c.l.b16 %v292
  %v332 = vunpack.c.l.b16 %v293
  %v333 = vunpack.c.l.b16 %v294
  %v334 = vunpack.c.l.b16 %v295
  %v335 = vunpack.c.l.b16 %v296
  %v336 = vunpack.c.l.b16 %v297
  %v337 = vunpack.c.l.b16 %v298
  %v338 = vunpack.c.l.b16 %v299
  %v339 = vunpack.c.l.b16 %v300
  %v340 = vunpack.c.l.b16 %v301
  %v341 = vunpack.c.l.b16 %v302
  %v342 = vunpack.c.l.b16 %v303
  %v343 = vunpack.c.l.b16 %v304
  %v344 = vpack.c.b16 %v329, %v328
  %v345 = vpack.c.b16 %v331, %v330
  %v346 = vpack.c.b16 %v333, %v332
  %v347 = vpack.c.b16 %v335, %v334
  %v348 = vpack.c.b16 %v337, %v336
  %v349 = vpack.c.b16 %v339, %v338
  %v350 = vpack.c.b16 %v341, %v340
  %v351 = vpack.c.b16 %v343, %v342
  %360 = vmatprep.subr.bf16.mxu0 0
  %361 = vmatpush1.bf16.msra.mxu0 %v344
  %362 = vmatprep.subr.bf16.mxu0 0
  %363 = vmatpush1.bf16.msra.mxu0 %v345
  %364 = vmatprep.subr.bf16.mxu0 0
  %365 = vmatpush1.bf16.msra.mxu0 %v346
  %366 = vmatprep.subr.bf16.mxu0 0
  %367 = vmatpush1.bf16.msra.mxu0 %v347
  %368 = vmatprep.subr.bf16.mxu0 0
  %369 = vmatpush1.bf16.msra.mxu0 %v348
  %370 = vmatprep.subr.bf16.mxu0 0
  %371 = vmatpush1.bf16.msra.mxu0 %v349
  %372 = vmatprep.subr.bf16.mxu0 0
  %373 = vmatpush1.bf16.msra.mxu0 %v350
  %374 = vmatprep.subr.bf16.mxu0 0
  %375 = vmatpush1.bf16.msra.mxu0 %v351
  %376 = vmatprep.subr.bf16.mxu0 0
  %377 = vmatpush1.bf16.msra.mxu0 0
  %378 = vmatprep.subr.bf16.mxu0 0
  %379 = vmatpush1.bf16.msra.mxu0 0
  %380 = vmatprep.subr.bf16.mxu0 0
  %381 = vmatpush1.bf16.msra.mxu0 0
  %382 = vmatprep.subr.bf16.mxu0 0
  %383 = vmatpush1.bf16.msra.mxu0 0
  %384 = vmatprep.subr.bf16.mxu0 0
  %385 = vmatpush1.bf16.msra.mxu0 0
  %386 = vmatprep.subr.bf16.mxu0 0
  %387 = vmatpush1.bf16.msra.mxu0 0
  %388 = vmatprep.subr.bf16.mxu0 0
  %389 = vmatpush1.bf16.msra.mxu0 0
  %390 = vmatprep.subr.bf16.mxu0 0
  %391 = vmatpush1.bf16.msra.mxu0 0
  %392 = vmatprep.mubr.bf16.mxu0 0
  %393 = vmatmul.mubr.bf16.gmra.mrb[0].mxu0 %v288
  %v394 = vpop.f32.mrb[0].mxu0
  %v395 = vadd.f32 %v310, %v394
  %v396 = vpop.f32.mrb[0].mxu0
  %v397 = vpop.f32.mrb[0].mxu0
  %v398 = vadd.f32 %v310, %v397
  %v399 = vpop.f32.mrb[0].mxu0
  %400 = vdwg.mxu0
  %v401 = vlaneseq
  %v402 = vand.u32 %v401, 127
  %vm403 = vcmp.lt.s32.totalorder %v402, 4
  %v404 = vsel %vm403, %v395, -1e+30
  %v405 = vsel %vm403, %v398, -1e+30
  %406 = vmax.xlane.f32.xlu0 %v404
  %v407 = vpop.xlane.xlu0 %406
  %408 = vmax.xlane.f32.xlu0 %v405
  %v409 = vpop.xlane.xlu0 %408
  %v410 = vsub.f32 %v404, %v407
  %v411 = vsub.f32 %v405, %v409
  %v412 = vmul.f32 %v410, 1.442695
  %v413 = vpow.pop %v412
  %v414 = vmul.f32 %v411, 1.442695
  %v415 = vpow.pop %v414
  %416 = vadd.xlane.f32.xlu0 %v413
  %v417 = vpop.xlane.xlu0 %416
  %418 = vadd.xlane.f32.xlu0 %v415
  %v419 = vpop.xlane.xlu0 %418
  %v420 = vlog2.pop %v417
  %v421 = vmul.f32 %v420, 0.6931472
  %v422 = vlog2.pop %v419
  %v423 = vmul.f32 %v422, 0.6931472
  %v424 = vsub.f32 %v410, %v421
  %v425 = vsub.f32 %v411, %v423
  %426 = vst [vmem:[%s7] sm:$0xff] %v424
  %427 = vst [vmem:[%s7 + $0x8] sm:$0xff] %v425
  // Predicated region
  $region30: #{cheb_conv_net_forward.1} parent=0 // pred_check
    _
  $region31: #{cheb_conv_net_forward.1} parent=0 // pred_check_branch
    %429 = sbr.rel (0) target = $region33
  $region32: #{cheb_conv_net_forward.1} parent=0 // pred_region
    _
  $region33: #{cheb_conv_net_forward.1} parent=0 // pred_fallthru
    _
  // Predicated region
  $region34: #{cheb_conv_net_forward.1} parent=0 // pred_check
    _
  $region35: #{cheb_conv_net_forward.1} parent=0 // pred_check_branch
    %431 = sbr.rel (0) target = $region37
  $region36: #{cheb_conv_net_forward.1} parent=0 // pred_region
    _
  $region37: #{cheb_conv_net_forward.1} parent=0 // pred_fallthru
    _

</llo_original>
